<compile_context>
chip_gen: v7x
topology: tpu7x:2x2x1
jax: 0.10.0
libtpu: 0.0.40
codegen_flags: <defaults>
</compile_context>

<pallas_src>
import functools
import inspect

import jax
import jax.numpy as jnp
from jax.experimental import pallas as pl
from jax.experimental.pallas import tpu as pltpu

LOG_STD_MIN = -20.0
LOG_STD_MAX = 2.0
_LANES = 128


def _round_up(x, m):
    return ((x + m - 1) // m) * m


def _cdiv(a, b):
    return -(-a // b)


def _choose_batch_tile(B, block_b):
    """Pick (tile_b, padded_B).  Batch sits on the lane axis, so any multi-tile
    split needs 128-aligned tiles; a single tile may match B exactly."""
    block_b = max(_LANES, _round_up(block_b, _LANES))
    if B <= block_b and B < 2 * _LANES:
        return B, B                                  # one tile, zero padding
    # multi-tile: balanced, lane-aligned tiles; >=2 steps feeds both v7x cores
    nt = max(2, _cdiv(B, block_b))
    tb = min(block_b, _round_up(_cdiv(B, nt), _LANES))
    nt = _cdiv(B, tb)
    # shrink the tile while padding is heavy (>12.5%) and shrinking strictly
    # reduces total padded work
    while tb > _LANES:
        pad = nt * tb - B
        if pad * 8 <= nt * tb:
            break
        tb2 = tb - _LANES
        nt2 = _cdiv(B, tb2)
        if nt2 * tb2 >= nt * tb:
            break
        tb, nt = tb2, nt2
    return tb, nt * tb


def actor_kernel(x_ref, w1_ref, b1_ref, w2_ref, b2_ref, wh_ref, bh_ref,
                 lo_ref, hi_ref, out_ref):
    x = x_ref[...]                                                  # (S, TB) bf16

    # fc1 + relu: (H, S) @ (S, TB) -> (H, TB), f32 accumulate
    h1 = jnp.dot(w1_ref[...], x, preferred_element_type=jnp.float32) + b1_ref[...]
    h1 = jnp.maximum(h1, 0.0).astype(jnp.bfloat16)

    # fc2 + relu: (H, H) @ (H, TB) -> (H, TB)
    h2 = jnp.dot(w2_ref[...], h1, preferred_element_type=jnp.float32) + b2_ref[...]
    h2 = jnp.maximum(h2, 0.0).astype(jnp.bfloat16)

    # fused [mean; log_std] head: (2A, H) @ (H, TB) -> (2A, TB)
    head = jnp.dot(wh_ref[...], h2, preferred_element_type=jnp.float32) + bh_ref[...]

    # per-row clamp: mean rows (-inf, +inf) are untouched, log_std rows clamp
    # to [-20, 2].  Two min/max ops, broadcast along lanes.
    head = jnp.minimum(jnp.maximum(head, lo_ref[...]), hi_ref[...])

    out_ref[...] = head.astype(out_ref.dtype)                        # (2A, TB)


def prepare_actor_params(p):
    """Hoisted per-parameter prep (head fusion, transposes, bf16 casts).
    Run once when parameters are created/updated, NOT per forward call."""
    A = p["wm"].shape[1]
    wh = jnp.concatenate([p["wm"], p["ws"]], axis=1)                 # (H, 2A)
    bh = jnp.concatenate([p["bm"], p["bs"]], axis=1)                 # (1, 2A)
    lo = jnp.concatenate([jnp.full((A, 1), -jnp.inf, jnp.float32),
                          jnp.full((A, 1), LOG_STD_MIN, jnp.float32)], axis=0)
    hi = jnp.concatenate([jnp.full((A, 1), jnp.inf, jnp.float32),
                          jnp.full((A, 1), LOG_STD_MAX, jnp.float32)], axis=0)
    return {
        "w1_t": p["w1"].T.astype(jnp.bfloat16),                      # (H, S)
        "b1":   p["b1"].T.astype(jnp.float32),                       # (H, 1)
        "w2_t": p["w2"].T.astype(jnp.bfloat16),                      # (H, H)
        "b2":   p["b2"].T.astype(jnp.float32),                       # (H, 1)
        "wh_t": wh.T.astype(jnp.bfloat16),                           # (2A, H)
        "bh":   bh.T.astype(jnp.float32),                            # (2A, 1)
        "lo":   lo,                                                  # (2A, 1)
        "hi":   hi,                                                  # (2A, 1)
    }


def actor_forward(state, kparams, *, block_b=512):
    """Actor forward pass: one batch-tiled Pallas kernel, weights VMEM-resident,
    batch on the lane axis (lane-dense stores)."""
    B, S = state.shape
    H = kparams["w1_t"].shape[0]
    two_a = kparams["wh_t"].shape[0]
    A = two_a // 2

    tb, Bp = _choose_batch_tile(B, block_b)
    num_tiles = Bp // tb

    x = state
    if Bp != B:
        x = jnp.pad(x, ((0, Bp - B), (0, 0)))
    x_t = x.astype(jnp.bfloat16).T                                   # (S, Bp)

    # weight / bias / bound blocks: full array, same block every grid step ->
    # parameters stay VMEM-resident across the batch tiles.
    resident = lambda shape: pl.BlockSpec(shape, lambda i: (0, 0))

    # Optionally deepen the input pipeline on the only streamed operand.
    state_kwargs = {}
    if (num_tiles >= 3 and hasattr(pl, "Buffered")
            and "pipeline_mode" in inspect.signature(pl.BlockSpec).parameters):
        state_kwargs["pipeline_mode"] = pl.Buffered(3)
    state_spec = pl.BlockSpec((S, tb), lambda i: (0, i), **state_kwargs)

    cost = pl.CostEstimate(
        flops=2 * Bp * (S * H + H * H + H * two_a),
        transcendentals=0,
        bytes_accessed=(2 * (Bp * S + S * H + H * H + H * two_a)     # bf16
                        + 4 * (2 * H + 3 * two_a + Bp * two_a)),     # f32
    )

    out = pl.pallas_call(
        actor_kernel,
        out_shape=jax.ShapeDtypeStruct((two_a, Bp), jnp.float32),
        grid=(num_tiles,),
        in_specs=[
            state_spec,                               # state^T: blocked over batch lanes
            resident((H, S)), resident((H, 1)),       # W1^T, b1
            resident((H, H)), resident((H, 1)),       # W2^T, b2
            resident((two_a, H)), resident((two_a, 1)),  # fused head W^T, b
            resident((two_a, 1)), resident((two_a, 1)),  # clamp lo, hi
        ],
        out_specs=pl.BlockSpec((two_a, tb), lambda i: (0, i)),
        compiler_params=pltpu.CompilerParams(
            dimension_semantics=("parallel",)),
        cost_estimate=cost,
    )(x_t,
      kparams["w1_t"], kparams["b1"],
      kparams["w2_t"], kparams["b2"],
      kparams["wh_t"], kparams["bh"],
      kparams["lo"], kparams["hi"])

    mean = out[:A, :B].T                              # back to (B, A)
    log_std = out[A:, :B].T
    return mean, log_std


def init_actor_params(key, state_size, action_size, hidden_size):
    """Deterministic synthetic init (PyTorch-Linear-like uniform fan-in scaling)."""
    ks = jax.random.split(key, 8)

    def linear(kw, kb, fan_in, fan_out):
        bound = 1.0 / jnp.sqrt(fan_in)
        w = jax.random.uniform(kw, (fan_in, fan_out), jnp.float32, -bound, bound)
        b = jax.random.uniform(kb, (1, fan_out), jnp.float32, -bound, bound)
        return w, b

    w1, b1 = linear(ks[0], ks[1], state_size, hidden_size)
    w2, b2 = linear(ks[2], ks[3], hidden_size, hidden_size)
    wm, bm = linear(ks[4], ks[5], hidden_size, action_size)
    ws, bs = linear(ks[6], ks[7], hidden_size, action_size)
    return {"w1": w1, "b1": b1, "w2": w2, "b2": b2,
            "wm": wm, "bm": bm, "ws": ws, "bs": bs}


def actor_forward_ref(state, p):
    """Pure-JAX f32 reference for correctness check."""
    h1 = jnp.maximum(state @ p["w1"] + p["b1"], 0.0)
    h2 = jnp.maximum(h1 @ p["w2"] + p["b2"], 0.0)
    mean = h2 @ p["wm"] + p["bm"]
    log_std = jnp.clip(h2 @ p["ws"] + p["bs"], LOG_STD_MIN, LOG_STD_MAX)
    return mean, log_std


if __name__ == "__main__":
    # TODO(synk): Actor.sample() (rsample + tanh-squashed log_prob) needs per-call
    # Gaussian noise; it stays in plain JAX and is out of scope for this kernel.
    batch, state_size, action_size, hidden_size = 8, 16, 4, 32

    key = jax.random.PRNGKey(0)
    k_state, k_params = jax.random.split(key)
    state = jax.random.normal(k_state, (batch, state_size), jnp.float32)
    params = init_actor_params(k_params, state_size, action_size, hidden_size)
    kparams = prepare_actor_params(params)           # hoisted out of hot path

    mean, log_std = actor_forward(state, kparams)
    mean = jax.block_until_ready(mean)
    log_std = jax.block_until_ready(log_std)

    mean_ref, log_std_ref = actor_forward_ref(state, params)
    assert mean.shape == (batch, action_size)
    assert log_std.shape == (batch, action_size)
    # bf16 matmul operands (f32 accumulate) -> loosened tolerances
    assert jnp.allclose(mean, mean_ref, atol=5e-2, rtol=5e-2)
    assert jnp.allclose(log_std, log_std_ref, atol=5e-2, rtol=5e-2)
    assert float(log_std.min()) >= LOG_STD_MIN and float(log_std.max()) <= LOG_STD_MAX

    print("KERNEL_OK")
</pallas_src>

<mosaic_0001>
module attributes {stable_mosaic.version = 11 : i64} {
  func.func @actor_kernel(%arg0: i32, %arg1: memref<16x8xbf16, #tpu.memory_space<vmem>>, %arg2: memref<32x16xbf16, #tpu.memory_space<vmem>>, %arg3: memref<32x1xf32, #tpu.memory_space<vmem>>, %arg4: memref<32x32xbf16, #tpu.memory_space<vmem>>, %arg5: memref<32x1xf32, #tpu.memory_space<vmem>>, %arg6: memref<8x32xbf16, #tpu.memory_space<vmem>>, %arg7: memref<8x1xf32, #tpu.memory_space<vmem>>, %arg8: memref<8x1xf32, #tpu.memory_space<vmem>>, %arg9: memref<8x1xf32, #tpu.memory_space<vmem>>, %arg10: memref<8x8xf32, #tpu.memory_space<vmem>>) attributes {dimension_semantics = [#tpu.dimension_semantics<parallel>], iteration_bounds = array<i64: 1>, scalar_prefetch = 0 : i64, scratch_operands = 0 : i64, tpu.core_type = #tpu.core_type<tc>, window_params = [{transform_indices = @transform_0, window_bounds = array<i64: 16, 8>}, {pipeline_mode = #tpu.pipeline_mode<synchronous>, transform_indices = @transform_1, window_bounds = array<i64: 32, 16>}, {pipeline_mode = #tpu.pipeline_mode<synchronous>, transform_indices = @transform_2, window_bounds = array<i64: 32, 1>}, {pipeline_mode = #tpu.pipeline_mode<synchronous>, transform_indices = @transform_3, window_bounds = array<i64: 32, 32>}, {pipeline_mode = #tpu.pipeline_mode<synchronous>, transform_indices = @transform_4, window_bounds = array<i64: 32, 1>}, {pipeline_mode = #tpu.pipeline_mode<synchronous>, transform_indices = @transform_5, window_bounds = array<i64: 8, 32>}, {pipeline_mode = #tpu.pipeline_mode<synchronous>, transform_indices = @transform_6, window_bounds = array<i64: 8, 1>}, {pipeline_mode = #tpu.pipeline_mode<synchronous>, transform_indices = @transform_7, window_bounds = array<i64: 8, 1>}, {pipeline_mode = #tpu.pipeline_mode<synchronous>, transform_indices = @transform_8, window_bounds = array<i64: 8, 1>}, {transform_indices = @transform_9, window_bounds = array<i64: 8, 8>}]} {
    %c0 = arith.constant 0 : index
    %c0_0 = arith.constant 0 : index
    %0 = vector.load %arg1[%c0, %c0_0] : memref<16x8xbf16, #tpu.memory_space<vmem>>, vector<16x8xbf16>
    %c0_1 = arith.constant 0 : index
    %c0_2 = arith.constant 0 : index
    %1 = vector.load %arg2[%c0_1, %c0_2] : memref<32x16xbf16, #tpu.memory_space<vmem>>, vector<32x16xbf16>
    %cst = arith.constant dense<0.000000e+00> : vector<32x8xf32>
    %2 = tpu.matmul %1, %0, %cst {dimension_numbers = #tpu.dot_dimension_numbers<[1], [0], [0], [1], [0, 0, 1, 1], [], []>} : vector<32x16xbf16>, vector<16x8xbf16>, vector<32x8xf32> -> vector<32x8xf32>
    %c0_3 = arith.constant 0 : index
    %c0_4 = arith.constant 0 : index
    %3 = vector.load %arg3[%c0_3, %c0_4] : memref<32x1xf32, #tpu.memory_space<vmem>>, vector<32x1xf32>
    %4 = vector.broadcast %3 : vector<32x1xf32> to vector<32x8xf32>
    %5 = arith.addf %2, %4 : vector<32x8xf32>
    %cst_5 = arith.constant 0.000000e+00 : f32
    %6 = vector.broadcast %cst_5 : f32 to vector<32x8xf32>
    %7 = arith.maximumf %5, %6 : vector<32x8xf32>
    %8 = arith.truncf %7 : vector<32x8xf32> to vector<32x8xbf16>
    %c0_6 = arith.constant 0 : index
    %c0_7 = arith.constant 0 : index
    %9 = vector.load %arg4[%c0_6, %c0_7] : memref<32x32xbf16, #tpu.memory_space<vmem>>, vector<32x32xbf16>
    %cst_8 = arith.constant dense<0.000000e+00> : vector<32x8xf32>
    %10 = tpu.matmul %9, %8, %cst_8 {dimension_numbers = #tpu.dot_dimension_numbers<[1], [0], [0], [1], [0, 0, 1, 1], [], []>} : vector<32x32xbf16>, vector<32x8xbf16>, vector<32x8xf32> -> vector<32x8xf32>
    %c0_9 = arith.constant 0 : index
    %c0_10 = arith.constant 0 : index
    %11 = vector.load %arg5[%c0_9, %c0_10] : memref<32x1xf32, #tpu.memory_space<vmem>>, vector<32x1xf32>
    %12 = vector.broadcast %11 : vector<32x1xf32> to vector<32x8xf32>
    %13 = arith.addf %10, %12 : vector<32x8xf32>
    %cst_11 = arith.constant 0.000000e+00 : f32
    %14 = vector.broadcast %cst_11 : f32 to vector<32x8xf32>
    %15 = arith.maximumf %13, %14 : vector<32x8xf32>
    %16 = arith.truncf %15 : vector<32x8xf32> to vector<32x8xbf16>
    %c0_12 = arith.constant 0 : index
    %c0_13 = arith.constant 0 : index
    %17 = vector.load %arg6[%c0_12, %c0_13] : memref<8x32xbf16, #tpu.memory_space<vmem>>, vector<8x32xbf16>
    %cst_14 = arith.constant dense<0.000000e+00> : vector<8x8xf32>
    %18 = tpu.matmul %17, %16, %cst_14 {dimension_numbers = #tpu.dot_dimension_numbers<[1], [0], [0], [1], [0, 0, 1, 1], [], []>} : vector<8x32xbf16>, vector<32x8xbf16>, vector<8x8xf32> -> vector<8x8xf32>
    %c0_15 = arith.constant 0 : index
    %c0_16 = arith.constant 0 : index
    %19 = vector.load %arg7[%c0_15, %c0_16] : memref<8x1xf32, #tpu.memory_space<vmem>>, vector<8x1xf32>
    %20 = vector.broadcast %19 : vector<8x1xf32> to vector<8x8xf32>
    %21 = arith.addf %18, %20 : vector<8x8xf32>
    %c0_17 = arith.constant 0 : index
    %c0_18 = arith.constant 0 : index
    %22 = vector.load %arg8[%c0_17, %c0_18] : memref<8x1xf32, #tpu.memory_space<vmem>>, vector<8x1xf32>
    %23 = vector.broadcast %22 : vector<8x1xf32> to vector<8x8xf32>
    %24 = arith.maximumf %21, %23 : vector<8x8xf32>
    %c0_19 = arith.constant 0 : index
    %c0_20 = arith.constant 0 : index
    %25 = vector.load %arg9[%c0_19, %c0_20] : memref<8x1xf32, #tpu.memory_space<vmem>>, vector<8x1xf32>
    %26 = vector.broadcast %25 : vector<8x1xf32> to vector<8x8xf32>
    %27 = arith.minimumf %24, %26 : vector<8x8xf32>
    %c0_21 = arith.constant 0 : index
    %c0_22 = arith.constant 0 : index
    %28 = vector.load %arg10[%c0_21, %c0_22] : memref<8x8xf32, #tpu.memory_space<vmem>>, vector<8x8xf32>
    tpu.vector_store %arg10[%c0_21, %c0_22], %27 {strides = array<i32>} : memref<8x8xf32, #tpu.memory_space<vmem>>, vector<8x8xf32>,
    return
  }
  func.func @transform_0(%arg0: i32) -> (i32, i32) {
    %c0_i32 = arith.constant 0 : i32
    %c0_i32_0 = arith.constant 0 : i32
    return %c0_i32, %arg0 : i32, i32
  }
  func.func @transform_1(%arg0: i32) -> (i32, i32) {
    %c0_i32 = arith.constant 0 : i32
    %c0_i32_0 = arith.constant 0 : i32
    %c0_i32_1 = arith.constant 0 : i32
    return %c0_i32, %c0_i32_0 : i32, i32
  }
  func.func @transform_2(%arg0: i32) -> (i32, i32) {
    %c0_i32 = arith.constant 0 : i32
    %c0_i32_0 = arith.constant 0 : i32
    %c0_i32_1 = arith.constant 0 : i32
    return %c0_i32, %c0_i32_0 : i32, i32
  }
  func.func @transform_3(%arg0: i32) -> (i32, i32) {
    %c0_i32 = arith.constant 0 : i32
    %c0_i32_0 = arith.constant 0 : i32
    %c0_i32_1 = arith.constant 0 : i32
    return %c0_i32, %c0_i32_0 : i32, i32
  }
  func.func @transform_4(%arg0: i32) -> (i32, i32) {
    %c0_i32 = arith.constant 0 : i32
    %c0_i32_0 = arith.constant 0 : i32
    %c0_i32_1 = arith.constant 0 : i32
    return %c0_i32, %c0_i32_0 : i32, i32
  }
  func.func @transform_5(%arg0: i32) -> (i32, i32) {
    %c0_i32 = arith.constant 0 : i32
    %c0_i32_0 = arith.constant 0 : i32
    %c0_i32_1 = arith.constant 0 : i32
    return %c0_i32, %c0_i32_0 : i32, i32
  }
  func.func @transform_6(%arg0: i32) -> (i32, i32) {
    %c0_i32 = arith.constant 0 : i32
    %c0_i32_0 = arith.constant 0 : i32
    %c0_i32_1 = arith.constant 0 : i32
    return %c0_i32, %c0_i32_0 : i32, i32
  }
  func.func @transform_7(%arg0: i32) -> (i32, i32) {
    %c0_i32 = arith.constant 0 : i32
    %c0_i32_0 = arith.constant 0 : i32
    %c0_i32_1 = arith.constant 0 : i32
    return %c0_i32, %c0_i32_0 : i32, i32
  }
  func.func @transform_8(%arg0: i32) -> (i32, i32) {
    %c0_i32 = arith.constant 0 : i32
    %c0_i32_0 = arith.constant 0 : i32
    %c0_i32_1 = arith.constant 0 : i32
    return %c0_i32, %c0_i32_0 : i32, i32
  }
  func.func @transform_9(%arg0: i32) -> (i32, i32) {
    %c0_i32 = arith.constant 0 : i32
    %c0_i32_0 = arith.constant 0 : i32
    return %c0_i32, %arg0 : i32, i32
  }
}

</mosaic_0001>

<llo_original>
// kernel: tpu_custom_call.1
$region0: #{tpu_custom_call.1}
  #allocation0 [shape = 'u32[]', space=smem, size = 0x4, offset = 0x4, fixed_abs, tag = 'smem constant byte address 0x4 - core index']
  #allocation1 [shape = 'u32[144,128]{1,0:T(1,128)}', space=vmem, size = 0x12000, scoped, tag = 'internal scratch']
  %s0 = inlined_call_operand.vmem [shape: bf16[16,8], index: 0, kind: input, shape index: {}]
  %s1 = inlined_call_operand.vmem [shape: bf16[32,16], index: 1, kind: input, shape index: {}]
  %s2 = inlined_call_operand.vmem [shape: f32[32,1], index: 2, kind: input, shape index: {}]
  %s3 = inlined_call_operand.vmem [shape: bf16[32,32], index: 3, kind: input, shape index: {}]
  %s4 = inlined_call_operand.vmem [shape: f32[32,1], index: 4, kind: input, shape index: {}]
  %s5 = inlined_call_operand.vmem [shape: bf16[8,32], index: 5, kind: input, shape index: {}]
  %s6 = inlined_call_operand.vmem [shape: f32[8,1], index: 6, kind: input, shape index: {}]
  %s7 = inlined_call_operand.vmem [shape: f32[8,1], index: 7, kind: input, shape index: {}]
  %s8 = inlined_call_operand.vmem [shape: f32[8,1], index: 8, kind: input, shape index: {}]
  %s9 = inlined_call_operand.hbm [shape: f32[8,8], index: 9, kind: output, shape index: {}]
  %s10 = sld [smem:[#allocation0]]
  $region46: #{tpu_custom_call.1} parent=0
    _
  %s12 = ssub.s32 1, %s10
  %s13 = scalar_select 0, %s12, %s10
  $region1: #{tpu_custom_call.1} parent=0
    #allocation2 [shape = 'u8[4096]{0}', space=vmem, size = 0x1000, scoped, tag = 'output window, operand 0, single buffered']
    #allocation3 [shape = 's32[1]{0}', space=sflag, size = 0x4, scoped, tag = 'scoped memory for tpu_custom_call.1']
    %14 = vsyncpa [#allocation3], 0
    // Predicated region
    $region2: #{tpu_custom_call.1} parent=1 // pred_check
      _
    $region3: #{tpu_custom_call.1} parent=1 // pred_check_branch
      %16 = sbr.rel (0) target = $region5
    $region4: #{tpu_custom_call.1} parent=1 // pred_region
      _
    $region5: #{tpu_custom_call.1} parent=1 // pred_fallthru
      _
    // Predicated region
    $region6: #{tpu_custom_call.1} parent=1 // pred_check
      _
    $region7: #{tpu_custom_call.1} parent=1 // pred_check_branch
      %18 = sbr.rel (0) target = $region9
    $region8: #{tpu_custom_call.1} parent=1 // pred_region
      _
    $region9: #{tpu_custom_call.1} parent=1 // pred_fallthru
      _
    // Predicated region
    $region10: #{tpu_custom_call.1} parent=1 // pred_check
      _
    $region11: #{tpu_custom_call.1} parent=1 // pred_check_branch
      %20 = sbr.rel (0) target = $region13
    $region12: #{tpu_custom_call.1} parent=1 // pred_region
      _
    $region13: #{tpu_custom_call.1} parent=1 // pred_fallthru
      _
    // Predicated region
    $region14: #{tpu_custom_call.1} parent=1 // pred_check
      _
    $region15: #{tpu_custom_call.1} parent=1 // pred_check_branch
      %22 = sbr.rel (0) target = $region17
    $region16: #{tpu_custom_call.1} parent=1 // pred_region
      _
    $region17: #{tpu_custom_call.1} parent=1 // pred_fallthru
      _
    // Predicated region
    $region18: #{tpu_custom_call.1} parent=1 // pred_check
      _
    $region19: #{tpu_custom_call.1} parent=1 // pred_check_branch
      %24 = sbr.rel (0) target = $region21
    $region20: #{tpu_custom_call.1} parent=1 // pred_region
      _
    $region21: #{tpu_custom_call.1} parent=1 // pred_fallthru
      _
    // Predicated region
    $region22: #{tpu_custom_call.1} parent=1 // pred_check
      _
    $region23: #{tpu_custom_call.1} parent=1 // pred_check_branch
      %26 = sbr.rel (0) target = $region25
    $region24: #{tpu_custom_call.1} parent=1 // pred_region
      _
    $region25: #{tpu_custom_call.1} parent=1 // pred_fallthru
      _
    // Predicated region
    $region26: #{tpu_custom_call.1} parent=1 // pred_check
      _
    $region27: #{tpu_custom_call.1} parent=1 // pred_check_branch
      %28 = sbr.rel (0) target = $region29
    $region28: #{tpu_custom_call.1} parent=1 // pred_region
      _
    $region29: #{tpu_custom_call.1} parent=1 // pred_fallthru
      _
    // Predicated region
    $region30: #{tpu_custom_call.1} parent=1 // pred_check
      _
    $region31: #{tpu_custom_call.1} parent=1 // pred_check_branch
      %30 = sbr.rel (0) target = $region33
    $region32: #{tpu_custom_call.1} parent=1 // pred_region
      _
    $region33: #{tpu_custom_call.1} parent=1 // pred_fallthru
      _
    // Predicated region
    $region34: #{tpu_custom_call.1} parent=1 // pred_check
      _
    $region35: #{tpu_custom_call.1} parent=1 // pred_check_branch
      %32 = sbr.rel (0) target = $region37
    $region36: #{tpu_custom_call.1} parent=1 // pred_region
      _
    $region37: #{tpu_custom_call.1} parent=1 // pred_fallthru
      _
    %v34 = vld [vmem:[%s0] sm:$0xf]
    %v35 = vld [vmem:[%s0 + $0x4] sm:$0xf]
    %v36 = vld [vmem:[%s1] sm:$0xf]
    %v37 = vld [vmem:[%s1 + $0x4] sm:$0xf]
    %v38 = vld [vmem:[%s1 + $0x8] sm:$0xf]
    %v39 = vld [vmem:[%s1 + $0xc] sm:$0xf]
    %v40 = vld [vmem:[%s2] sm:$0xff]
    %v41 = vld [vmem:[%s2 + $0x8] sm:$0xff]
    %v42 = vld [vmem:[%s2 + $0x10] sm:$0xff]
    %v43 = vld [vmem:[%s2 + $0x18] sm:$0xff]
    %45 = vset.pattern.permute.xlu0 0
    %46 = vperm.xlu0 %45, %v40
    %v47 = vpop.permute.xlu0 %46
    %50 = vset.pattern.permute.xlu0 0
    %51 = vperm.xlu0 %50, %v41
    %v52 = vpop.permute.xlu0 %51
    %55 = vset.pattern.permute.xlu0 0
    %56 = vperm.xlu0 %55, %v42
    %v57 = vpop.permute.xlu0 %56
    %60 = vset.pattern.permute.xlu0 0
    %61 = vperm.xlu0 %60, %v43
    %v62 = vpop.permute.xlu0 %61
    %v68 = vunpack.c.l.b16 %v36
    %v69 = vunpack.c.l.b16 %v37
    %v70 = vunpack.c.l.b16 %v38
    %v71 = vunpack.c.l.b16 %v39
    %v72 = vpack.c.b16 %v69, %v68
    %v73 = vpack.c.b16 %v71, %v70
    %v76 = vunpack.c.l.b16 %v34
    %v77 = vunpack.c.l.b16 %v35
    %v78 = vpack.c.b16 %v77, %v76
    %vm80 = vcmask 130048
    %v82 = vsel %vm80, %v72, 0
    %v85 = vsel %vm80, %v73, 0
    %87 = vmatprep.subr.bf16.mxu0 0
    %88 = vmatpush1.bf16.msra.mxu0 %v78
    %89 = vmatprep.subr.bf16.mxu0 0
    %90 = vmatpush1.bf16.msra.mxu0 0
    %91 = vmatprep.subr.bf16.mxu0 0
    %92 = vmatpush1.bf16.msra.mxu0 0
    %93 = vmatprep.subr.bf16.mxu0 0
    %94 = vmatpush1.bf16.msra.mxu0 0
    %95 = vmatprep.subr.bf16.mxu0 0
    %96 = vmatpush1.bf16.msra.mxu0 0
    %97 = vmatprep.subr.bf16.mxu0 0
    %98 = vmatpush1.bf16.msra.mxu0 0
    %99 = vmatprep.subr.bf16.mxu0 0
    %100 = vmatpush1.bf16.msra.mxu0 0
    %101 = vmatprep.subr.bf16.mxu0 0
    %102 = vmatpush1.bf16.msra.mxu0 0
    %103 = vmatprep.subr.bf16.mxu0 0
    %104 = vmatpush1.bf16.msra.mxu0 0
    %105 = vmatprep.subr.bf16.mxu0 0
    %106 = vmatpush1.bf16.msra.mxu0 0
    %107 = vmatprep.subr.bf16.mxu0 0
    %108 = vmatpush1.bf16.msra.mxu0 0
    %109 = vmatprep.subr.bf16.mxu0 0
    %110 = vmatpush1.bf16.msra.mxu0 0
    %111 = vmatprep.subr.bf16.mxu0 0
    %112 = vmatpush1.bf16.msra.mxu0 0
    %113 = vmatprep.subr.bf16.mxu0 0
    %114 = vmatpush1.bf16.msra.mxu0 0
    %115 = vmatprep.subr.bf16.mxu0 0
    %116 = vmatpush1.bf16.msra.mxu0 0
    %117 = vmatprep.subr.bf16.mxu0 0
    %118 = vmatpush1.bf16.msra.mxu0 0
    %119 = vmatprep.mubr.bf16.mxu0 0
    %120 = vmatmul.mubr.bf16.gmra.mrb[0].mxu0 %v82
    %v121 = vpop.f32.mrb[0].mxu0
    %v122 = vadd.f32 %v47, %v121
    %v123 = vpop.f32.mrb[0].mxu0
    %v124 = vpop.f32.mrb[0].mxu0
    %v125 = vadd.f32 %v52, %v124
    %v126 = vpop.f32.mrb[0].mxu0
    %127 = vmatprep.mubr.bf16.mxu0 0
    %128 = vmatmul.mubr.bf16.gmra.mrb[0].mxu0 %v85
    %v129 = vpop.f32.mrb[0].mxu0
    %v130 = vadd.f32 %v57, %v129
    %v131 = vpop.f32.mrb[0].mxu0
    %v132 = vpop.f32.mrb[0].mxu0
    %v133 = vadd.f32 %v62, %v132
    %v134 = vpop.f32.mrb[0].mxu0
    %135 = vdwg.mxu0
    %v136 = vmax.f32 %v122, 0.0
    %v137 = vmax.f32 %v125, 0.0
    %v138 = vmax.f32 %v130, 0.0
    %v139 = vmax.f32 %v133, 0.0
    %v140 = vpack.c.bf16 %v137, %v136
    %v141 = vpack.c.bf16 %v139, %v138
    %v142 = vld [vmem:[%s3] sm:$0xf]
    %v143 = vld [vmem:[%s3 + $0x4] sm:$0xf]
    %v144 = vld [vmem:[%s3 + $0x8] sm:$0xf]
    %v145 = vld [vmem:[%s3 + $0xc] sm:$0xf]
    %v146 = vld [vmem:[%s4] sm:$0xff]
    %v147 = vld [vmem:[%s4 + $0x8] sm:$0xff]
    %v148 = vld [vmem:[%s4 + $0x10] sm:$0xff]
    %v149 = vld [vmem:[%s4 + $0x18] sm:$0xff]
    %151 = vset.pattern.permute.xlu0 0
    %152 = vperm.xlu0 %151, %v146
    %v153 = vpop.permute.xlu0 %152
    %156 = vset.pattern.permute.xlu0 0
    %157 = vperm.xlu0 %156, %v147
    %v158 = vpop.permute.xlu0 %157
    %161 = vset.pattern.permute.xlu0 0
    %162 = vperm.xlu0 %161, %v148
    %v163 = vpop.permute.xlu0 %162
    %166 = vset.pattern.permute.xlu0 0
    %167 = vperm.xlu0 %166, %v149
    %v168 = vpop.permute.xlu0 %167
    %v174 = vunpack.c.l.b16 %v142
    %v175 = vunpack.c.l.b16 %v143
    %v176 = vunpack.c.l.b16 %v144
    %v177 = vunpack.c.l.b16 %v145
    %v178 = vpack.c.b16 %v175, %v174
    %v179 = vpack.c.b16 %v177, %v176
    %vm180 = vcmask 261120
    %v182 = vsel %vm180, %v178, 0
    %v185 = vsel %vm180, %v179, 0
    %187 = vmatprep.subr.bf16.mxu0 0
    %188 = vmatpush1.bf16.msra.mxu0 %v140
    %189 = vmatprep.subr.bf16.mxu0 0
    %190 = vmatpush1.bf16.msra.mxu0 %v141
    %191 = vmatprep.subr.bf16.mxu0 0
    %192 = vmatpush1.bf16.msra.mxu0 0
    %193 = vmatprep.subr.bf16.mxu0 0
    %194 = vmatpush1.bf16.msra.mxu0 0
    %195 = vmatprep.subr.bf16.mxu0 0
    %196 = vmatpush1.bf16.msra.mxu0 0
    %197 = vmatprep.subr.bf16.mxu0 0
    %198 = vmatpush1.bf16.msra.mxu0 0
    %199 = vmatprep.subr.bf16.mxu0 0
    %200 = vmatpush1.bf16.msra.mxu0 0
    %201 = vmatprep.subr.bf16.mxu0 0
    %202 = vmatpush1.bf16.msra.mxu0 0
    %203 = vmatprep.subr.bf16.mxu0 0
    %204 = vmatpush1.bf16.msra.mxu0 0
    %205 = vmatprep.subr.bf16.mxu0 0
    %206 = vmatpush1.bf16.msra.mxu0 0
    %207 = vmatprep.subr.bf16.mxu0 0
    %208 = vmatpush1.bf16.msra.mxu0 0
    %209 = vmatprep.subr.bf16.mxu0 0
    %210 = vmatpush1.bf16.msra.mxu0 0
    %211 = vmatprep.subr.bf16.mxu0 0
    %212 = vmatpush1.bf16.msra.mxu0 0
    %213 = vmatprep.subr.bf16.mxu0 0
    %214 = vmatpush1.bf16.msra.mxu0 0
    %215 = vmatprep.subr.bf16.mxu0 0
    %216 = vmatpush1.bf16.msra.mxu0 0
    %217 = vmatprep.subr.bf16.mxu0 0
    %218 = vmatpush1.bf16.msra.mxu0 0
    %219 = vmatprep.mubr.bf16.mxu0 0
    %220 = vmatmul.mubr.bf16.gmra.mrb[0].mxu0 %v182
    %v221 = vpop.f32.mrb[0].mxu0
    %v222 = vadd.f32 %v153, %v221
    %v223 = vpop.f32.mrb[0].mxu0
    %v224 = vpop.f32.mrb[0].mxu0
    %v225 = vadd.f32 %v158, %v224
    %v226 = vpop.f32.mrb[0].mxu0
    %227 = vmatprep.mubr.bf16.mxu0 0
    %228 = vmatmul.mubr.bf16.gmra.mrb[0].mxu0 %v185
    %v229 = vpop.f32.mrb[0].mxu0
    %v230 = vadd.f32 %v163, %v229
    %v231 = vpop.f32.mrb[0].mxu0
    %v232 = vpop.f32.mrb[0].mxu0
    %v233 = vadd.f32 %v168, %v232
    %v234 = vpop.f32.mrb[0].mxu0
    %235 = vdwg.mxu0
    %v236 = vmax.f32 %v222, 0.0
    %v237 = vmax.f32 %v225, 0.0
    %v238 = vmax.f32 %v230, 0.0
    %v239 = vmax.f32 %v233, 0.0
    %v240 = vpack.c.bf16 %v237, %v236
    %v241 = vpack.c.bf16 %v239, %v238
    %v242 = vld [vmem:[%s5] sm:$0xf]
    %v243 = vld [vmem:[%s6] sm:$0xff]
    %245 = vset.pattern.permute.xlu0 0
    %246 = vperm.xlu0 %245, %v243
    %v247 = vpop.permute.xlu0 %246
    %v250 = vsel %vm180, %v242, 0
    %252 = vmatprep.subr.bf16.mxu0 0
    %253 = vmatpush1.bf16.msra.mxu0 %v240
    %254 = vmatprep.subr.bf16.mxu0 0
    %255 = vmatpush1.bf16.msra.mxu0 %v241
    %256 = vmatprep.subr.bf16.mxu0 0
    %257 = vmatpush1.bf16.msra.mxu0 0
    %258 = vmatprep.subr.bf16.mxu0 0
    %259 = vmatpush1.bf16.msra.mxu0 0
    %260 = vmatprep.subr.bf16.mxu0 0
    %261 = vmatpush1.bf16.msra.mxu0 0
    %262 = vmatprep.subr.bf16.mxu0 0
    %263 = vmatpush1.bf16.msra.mxu0 0
    %264 = vmatprep.subr.bf16.mxu0 0
    %265 = vmatpush1.bf16.msra.mxu0 0
    %266 = vmatprep.subr.bf16.mxu0 0
    %267 = vmatpush1.bf16.msra.mxu0 0
    %268 = vmatprep.subr.bf16.mxu0 0
    %269 = vmatpush1.bf16.msra.mxu0 0
    %270 = vmatprep.subr.bf16.mxu0 0
    %271 = vmatpush1.bf16.msra.mxu0 0
    %272 = vmatprep.subr.bf16.mxu0 0
    %273 = vmatpush1.bf16.msra.mxu0 0
    %274 = vmatprep.subr.bf16.mxu0 0
    %275 = vmatpush1.bf16.msra.mxu0 0
    %276 = vmatprep.subr.bf16.mxu0 0
    %277 = vmatpush1.bf16.msra.mxu0 0
    %278 = vmatprep.subr.bf16.mxu0 0
    %279 = vmatpush1.bf16.msra.mxu0 0
    %280 = vmatprep.subr.bf16.mxu0 0
    %281 = vmatpush1.bf16.msra.mxu0 0
    %282 = vmatprep.subr.bf16.mxu0 0
    %283 = vmatpush1.bf16.msra.mxu0 0
    %284 = vmatprep.mubr.bf16.mxu0 0
    %285 = vmatmul.mubr.bf16.gmra.mrb[0].mxu0 %v250
    %v286 = vpop.f32.mrb[0].mxu0
    %v287 = vadd.f32 %v247, %v286
    %v288 = vpop.f32.mrb[0].mxu0
    %v289 = vpop.f32.mrb[0].mxu0
    %v290 = vpop.f32.mrb[0].mxu0
    %291 = vdwg.mxu0
    %v292 = vld [vmem:[%s7] sm:$0xff]
    %294 = vset.pattern.permute.xlu0 0
    %295 = vperm.xlu0 %294, %v292
    %v296 = vpop.permute.xlu0 %295
    %v298 = vmax.f32 %v287, %v296
    %v299 = vld [vmem:[%s8] sm:$0xff]
    %301 = vset.pattern.permute.xlu0 0
    %302 = vperm.xlu0 %301, %v299
    %v303 = vpop.permute.xlu0 %302
    %v305 = vmin.f32 %v298, %v303
    %vm306 = vcmask 64512
    %307 = vst.msk [vmem:[#allocation2] sm:$0xff] %vm306, %v305
    // Predicated region
    $region38: #{tpu_custom_call.1} parent=1 // pred_check
      _
    $region39: #{tpu_custom_call.1} parent=1 // pred_check_branch
      %309 = sbr.rel (0) target = $region41
    $region40: #{tpu_custom_call.1} parent=1 // pred_region
      %s311 = ssub.s32 128, 128
      %312 = vsyncadd [#allocation3], %s311
      %s314 = sshll.u32 [#allocation2], 4
      %s315 = int_to_ptr.vmem [resolvable:$true] %s314
      %317 = dma.vmem_to_hbm [thread:$0]  %s315, 128, %s9, [#allocation3]
    $region41: #{tpu_custom_call.1} parent=1 // pred_fallthru
      _
    // Predicated region
    $region42: #{tpu_custom_call.1} parent=1 // pred_check
      _
    $region43: #{tpu_custom_call.1} parent=1 // pred_check_branch
      %319 = sbr.rel (0) target = $region45
    $region44: #{tpu_custom_call.1} parent=1 // pred_region
      %320 = dma.done [#allocation3], 128
    $region45: #{tpu_custom_call.1} parent=1 // pred_fallthru
      _
    %321 = vsyncpa [#allocation3], 1

</llo_original>
